<compile_context>
chip_gen: v5e
topology: v5e:2x2
jax: 0.10.0
libtpu: 0.0.40
codegen_flags: <defaults>
</compile_context>

<pallas_src>
import functools

import jax
import jax.numpy as jnp
from jax import lax
from jax.experimental import pallas as pl
from jax.experimental.pallas import tpu as pltpu


def _round_up(x, m):
    return ((x + m - 1) // m) * m


def _num_tensorcores():
    """TensorCores addressable by one kernel launch (2 on v7x-style megacore
    parts, 1 on v5e/v6e). Falls back to 1, which is always correct."""
    try:
        dev = jax.devices()[0]
    except Exception:
        return 1
    if getattr(dev, "platform", None) != "tpu":
        return 1
    for attr in ("num_cores", "core_count"):
        val = getattr(dev, attr, None)
        if isinstance(val, int) and val > 0:
            return min(2, int(val))
    return 1


def _vmem_capacity_bytes():
    """Per-core VMEM capacity; conservative 64 MiB (v7x) fallback."""
    try:
        cap = int(pltpu.get_tpu_info().vmem_capacity_bytes)
        if cap > 0:
            return cap
    except Exception:
        pass
    return 64 * 1024 * 1024


def _weighted_mse_pca_kernel(x_ref, t_ref, cw_ref, mean_ref, wfos_ref,
                             out_ref, acc_ref, *, batch, tile_rows, sub_rows,
                             n_chunks, tiles_per_core):
    # x_ref/t_ref/cw_ref : VMEM (tile_rows, F) tiles, caller dtype
    # mean_ref, wfos_ref : VMEM (1, F) f32 (data_mean, weight_factor/data_std)
    # out_ref            : VMEM (1, 8, 128) f32 per-core partial-sum slab
    # acc_ref            : VMEM (8, F) f32 running partial sums (per core)
    c = pl.program_id(0)
    i = pl.program_id(1)

    @pl.when(i == 0)
    def _init():
        acc_ref[...] = jnp.zeros_like(acc_ref)

    mean = mean_ref[...]            # (1, F) f32
    wfos = wfos_ref[...]            # (1, F) f32  == weight_factor / data_std
    feat = mean.shape[1]

    # Un-clamped global row-tile index. The DMA index_map clamps separately,
    # so out-of-range (c, i) pairs still fetch a valid block; those rows are
    # then fully masked here and contribute exactly 0.
    g = c * tiles_per_core + i
    row0 = g * tile_rows
    tile_full = (row0 + tile_rows) <= batch

    def process(masked):
        def body(j, carry):
            start = pl.multiple_of(j * sub_rows, sub_rows)
            x = x_ref[pl.ds(start, sub_rows), :].astype(jnp.float32)
            t = t_ref[pl.ds(start, sub_rows), :].astype(jnp.float32)
            cw = cw_ref[pl.ds(start, sub_rows), :].astype(jnp.float32)
            # weights = (1 + |t - mean| * (wf / std)) * custom_weights
            w = (1.0 + jnp.abs(t - mean) * wfos) * cw
            wse = w * (x - t) ** 2                      # (sub_rows, F) f32
            if masked:
                rows = lax.broadcasted_iota(jnp.int32, wse.shape, 0)
                rows = rows + (row0 + start)
                # Zero via select (garbage in OOB rows may be NaN; NaN*0=NaN).
                wse = jnp.where(rows < batch, wse, 0.0)
            # Reduce only the leading (non-layout) axis -> pure VPU vreg adds;
            # the expensive cross-lane/sublane reduce waits for the epilogue.
            acc_ref[...] += wse.reshape(sub_rows // 8, 8, feat).sum(axis=0)
            return carry

        if n_chunks == 1:
            body(0, 0)
        else:
            lax.fori_loop(0, n_chunks, body, 0, unroll=(n_chunks <= 4))

    @pl.when(tile_full)
    def _hot():
        process(False)

    @pl.when(jnp.logical_not(tile_full))
    def _boundary():
        process(True)

    @pl.when(i == pl.num_programs(1) - 1)
    def _finalize():
        # One cross-lane/sublane reduce per core; broadcast the per-core
        # partial over this core's (8, 128) output slab (lane-aligned store).
        out_ref[0] = jnp.full((8, 128), jnp.sum(acc_ref[...]), jnp.float32)


def weighted_mse_pca_loss(inputs, targets, data_mean, data_std,
                          weight_factor=1.0, custom_weights=None, *,
                          tile_rows=None, num_cores=None):
    """Pallas implementation of WeightedMSEPCALoss.forward.

    inputs, targets, custom_weights: (..., F) arrays (f32 or bf16)
    data_mean, data_std            : (F,) (or scalar) per-feature statistics
    weight_factor                  : python float / 0-d array
    Returns a scalar float32 loss (mean over all elements).
    """
    inputs = jnp.asarray(inputs)
    targets = jnp.asarray(targets)
    if inputs.shape != targets.shape:
        raise ValueError("Input and target must have the same shape.")
    if inputs.ndim == 0:
        raise ValueError("Input must have at least one dimension.")

    F = int(inputs.shape[-1])
    B = 1
    for d in inputs.shape[:-1]:
        B *= int(d)
    n_elems = B * F

    x2 = inputs.reshape(B, F)
    t2 = targets.reshape(B, F)

    if custom_weights is None:
        # TODO(synk): add a no-custom-weights kernel variant so this third HBM
        # stream can be skipped entirely instead of streaming ones.
        cw2 = jnp.ones((B, F), inputs.dtype)
    else:
        cw = jnp.asarray(custom_weights)
        if cw.ndim == 1:
            cw = cw[None, :]
        if cw.shape != inputs.shape and cw.shape != (B, F):
            raise ValueError("Custom weights shape must match input/target shape.")
        cw2 = cw.reshape(B, F)

    # Tiny (1, F) stat vectors; fold weight_factor / data_std into one vector
    # so the hot loop has no per-element divide.
    mean = jnp.broadcast_to(
        jnp.asarray(data_mean, jnp.float32).reshape(-1), (F,)).reshape(1, F)
    std = jnp.broadcast_to(
        jnp.asarray(data_std, jnp.float32).reshape(-1), (F,)).reshape(1, F)
    wfos = jnp.asarray(weight_factor, jnp.float32) / std           # (1, F)

    # --- core / tile sizing (dtype-aware, per-generation VMEM budget) -------
    C = int(num_cores) if num_cores is not None else _num_tensorcores()
    C = max(1, min(2, C))

    itemsize = int(inputs.dtype.itemsize)
    lane_f = _round_up(F, 128)
    bytes_per_row = lane_f * itemsize                 # VMEM bytes per tile row

    vmem_cap = _vmem_capacity_bytes()
    vmem_limit = min((vmem_cap * 3) // 4, 100 * 1024 * 1024)   # 48 MiB v7x / 96 MiB v5e,v6e
    reserve = 6 * 1024 * 1024                          # temps, acc, stats, slack
    per_stream = max(512 * 1024,
                     min(8 * 1024 * 1024, (vmem_limit - reserve) // 6))

    rows_per_core = _round_up(pl.cdiv(B, C), 8)
    if tile_rows is None:
        tr = max(8, (per_stream // bytes_per_row) // 8 * 8)
    else:
        tr = max(8, _round_up(int(tile_rows), 8))
    tr = min(tr, rows_per_core)

    SUB = 256                                          # in-kernel sub-block rows
    if tr > SUB:
        tr = (tr // SUB) * SUB
        sub = SUB
    else:
        sub = tr
    n_chunks = tr // sub

    total_tiles = pl.cdiv(B, tr)
    tiles_per_core = pl.cdiv(total_tiles, C)
    grid = (C, tiles_per_core)

    def stream_map(c, i):
        # Clamp so out-of-range (c, i) pairs still DMA a valid block; the
        # kernel masks them to zero using the un-clamped tile index.
        return (jnp.minimum(c * tiles_per_core + i, total_tiles - 1), 0)

    stream_spec = pl.BlockSpec((tr, F), stream_map)
    vec_spec = pl.BlockSpec((1, F), lambda c, i: (0, 0))

    kernel = functools.partial(
        _weighted_mse_pca_kernel, batch=B, tile_rows=tr, sub_rows=sub,
        n_chunks=n_chunks, tiles_per_core=tiles_per_core)

    partials = pl.pallas_call(
        kernel,
        out_shape=jax.ShapeDtypeStruct((C, 8, 128), jnp.float32),
        grid_spec=pltpu.PrefetchScalarGridSpec(
            num_scalar_prefetch=0,
            grid=grid,
            in_specs=[stream_spec, stream_spec, stream_spec, vec_spec, vec_spec],
            out_specs=pl.BlockSpec((1, 8, 128), lambda c, i: (c, 0, 0)),
            scratch_shapes=[pltpu.VMEM((8, F), jnp.float32)],
        ),
        compiler_params=pltpu.CompilerParams(
            dimension_semantics=("parallel", "arbitrary"),
            vmem_limit_bytes=int(vmem_limit),
        ),
    )(x2, t2, cw2, mean, wfos)

    return partials[:, 0, 0].sum() * jnp.float32(1.0 / n_elems)


def _reference(inputs, targets, data_mean, data_std, weight_factor,
               custom_weights):
    inputs = inputs.astype(jnp.float32)
    targets = targets.astype(jnp.float32)
    custom_weights = custom_weights.astype(jnp.float32)
    deviation = jnp.abs(targets - data_mean[None, :])
    normalized_deviation = deviation / data_std[None, :]
    weights = 1.0 + normalized_deviation * weight_factor
    weights = weights * custom_weights
    return jnp.mean(weights * (inputs - targets) ** 2)


if __name__ == "__main__":
    key = jax.random.PRNGKey(0)
    # Deliberately ragged small shapes: B=40 (not a tile multiple), F=160
    # (not a lane multiple) to exercise in-kernel boundary masking.
    B, F = 40, 160

    k1, k2, k3, k4, k5 = jax.random.split(key, 5)
    inputs = jax.random.normal(k1, (B, F), jnp.float32)
    targets = jax.random.normal(k2, (B, F), jnp.float32)
    data_mean = jax.random.normal(k3, (F,), jnp.float32) * 0.1
    data_std = jax.random.uniform(k4, (F,), jnp.float32, minval=0.5, maxval=1.5)
    custom_weights = jax.random.uniform(k5, (B, F), jnp.float32,
                                        minval=0.5, maxval=2.0)
    weight_factor = 1.0

    ref = _reference(inputs, targets, data_mean, data_std, weight_factor,
                     custom_weights)

    # Default path (auto tile sizing / auto core count).
    loss = jax.block_until_ready(
        weighted_mse_pca_loss(inputs, targets, data_mean, data_std,
                              weight_factor, custom_weights))
    assert jnp.allclose(loss, ref, rtol=1e-5, atol=1e-5), (loss, ref)

    # Forced multi-tile, two-"core" grid: exercises boundary masking, the
    # clamped index_map and per-core partial outputs (sequential on a
    # single-TC chip, parallel on v7x).
    loss2 = jax.block_until_ready(
        weighted_mse_pca_loss(inputs, targets, data_mean, data_std,
                              weight_factor, custom_weights,
                              tile_rows=16, num_cores=2))
    assert jnp.allclose(loss2, ref, rtol=1e-5, atol=1e-5), (loss2, ref)

    # bf16 streaming path (dtype-preserving HBM reads, f32 accumulation).
    inputs_bf = inputs.astype(jnp.bfloat16)
    targets_bf = targets.astype(jnp.bfloat16)
    cw_bf = custom_weights.astype(jnp.bfloat16)
    ref_bf = _reference(inputs_bf.astype(jnp.float32),
                        targets_bf.astype(jnp.float32),
                        data_mean, data_std, weight_factor,
                        cw_bf.astype(jnp.float32))
    loss3 = jax.block_until_ready(
        weighted_mse_pca_loss(inputs_bf, targets_bf, data_mean, data_std,
                              weight_factor, cw_bf))
    assert jnp.allclose(loss3, ref_bf, rtol=1e-4, atol=1e-4), (loss3, ref_bf)

    print("KERNEL_OK")
</pallas_src>

<mosaic_0001>
module attributes {stable_mosaic.version = 11 : i64} {
  func.func @_weighted_mse_pca_kernel(%arg0: i32, %arg1: i32, %arg2: memref<40x160xf32, #tpu.memory_space<vmem>>, %arg3: memref<40x160xf32, #tpu.memory_space<vmem>>, %arg4: memref<40x160xf32, #tpu.memory_space<vmem>>, %arg5: memref<1x160xf32, #tpu.memory_space<vmem>>, %arg6: memref<1x160xf32, #tpu.memory_space<vmem>>, %arg7: memref<1x8x128xf32, #tpu.memory_space<vmem>>, %arg8: memref<8x160xf32, #tpu.memory_space<vmem>>) attributes {dimension_semantics = [#tpu.dimension_semantics<parallel>, #tpu.dimension_semantics<arbitrary>], iteration_bounds = array<i64: 1, 1>, scalar_prefetch = 0 : i64, scratch_operands = 1 : i64, tpu.core_type = #tpu.core_type<tc>, window_params = [{transform_indices = @transform_0, window_bounds = array<i64: 40, 160>}, {transform_indices = @transform_1, window_bounds = array<i64: 40, 160>}, {transform_indices = @transform_2, window_bounds = array<i64: 40, 160>}, {pipeline_mode = #tpu.pipeline_mode<synchronous>, transform_indices = @transform_3, window_bounds = array<i64: 1, 160>}, {pipeline_mode = #tpu.pipeline_mode<synchronous>, transform_indices = @transform_4, window_bounds = array<i64: 1, 160>}, {transform_indices = @transform_5, window_bounds = array<i64: 1, 8, 128>}]} {
    %c0_i32 = arith.constant 0 : i32
    %0 = arith.cmpi eq, %arg1, %c0_i32 : i32
    %1 = arith.extui %0 : i1 to i32
    %c0_i32_0 = arith.constant 0 : i32
    %2 = arith.cmpi ne, %1, %c0_i32_0 : i32
    scf.if %2 {
      %cst = arith.constant 0.000000e+00 : f32
      %18 = vector.broadcast %cst : f32 to vector<8x160xf32>
      %c0_10 = arith.constant 0 : index
      %c0_11 = arith.constant 0 : index
      %19 = vector.load %arg8[%c0_10, %c0_11] : memref<8x160xf32, #tpu.memory_space<vmem>>, vector<8x160xf32>
      tpu.vector_store %arg8[%c0_10, %c0_11], %18 {strides = array<i32>} : memref<8x160xf32, #tpu.memory_space<vmem>>, vector<8x160xf32>,
    } else {
    }
    %c0 = arith.constant 0 : index
    %c0_1 = arith.constant 0 : index
    %3 = vector.load %arg5[%c0, %c0_1] : memref<1x160xf32, #tpu.memory_space<vmem>>, vector<1x160xf32>
    %c0_2 = arith.constant 0 : index
    %c0_3 = arith.constant 0 : index
    %4 = vector.load %arg6[%c0_2, %c0_3] : memref<1x160xf32, #tpu.memory_space<vmem>>, vector<1x160xf32>
    %c1_i32 = arith.constant 1 : i32
    %5 = arith.muli %arg0, %c1_i32 : i32
    %6 = arith.addi %5, %arg1 : i32
    %c40_i32 = arith.constant 40 : i32
    %7 = arith.muli %6, %c40_i32 : i32
    %c40_i32_4 = arith.constant 40 : i32
    %8 = arith.addi %7, %c40_i32_4 : i32
    %c40_i32_5 = arith.constant 40 : i32
    %9 = arith.cmpi sle, %8, %c40_i32_5 : i32
    %10 = arith.extui %9 : i1 to i32
    %c0_i32_6 = arith.constant 0 : i32
    %11 = arith.cmpi ne, %10, %c0_i32_6 : i32
    scf.if %11 {
      %c0_i32_10 = arith.constant 0 : i32
      %18 = tpu.assume_multiple %c0_i32_10, 40 : i32
      %19 = arith.index_cast %18 : i32 to index
      %c0_11 = arith.constant 0 : index
      %20 = vector.load %arg2[%19, %c0_11] : memref<40x160xf32, #tpu.memory_space<vmem>>, vector<40x160xf32>
      %21 = arith.index_cast %18 : i32 to index
      %c0_12 = arith.constant 0 : index
      %22 = vector.load %arg3[%21, %c0_12] : memref<40x160xf32, #tpu.memory_space<vmem>>, vector<40x160xf32>
      %23 = arith.index_cast %18 : i32 to index
      %c0_13 = arith.constant 0 : index
      %24 = vector.load %arg4[%23, %c0_13] : memref<40x160xf32, #tpu.memory_space<vmem>>, vector<40x160xf32>
      %25 = vector.broadcast %3 : vector<1x160xf32> to vector<40x160xf32>
      %26 = arith.subf %22, %25 : vector<40x160xf32>
      %27 = math.absf %26 : vector<40x160xf32>
      %28 = vector.broadcast %4 : vector<1x160xf32> to vector<40x160xf32>
      %29 = arith.mulf %27, %28 : vector<40x160xf32>
      %cst = arith.constant 1.000000e+00 : f32
      %30 = vector.broadcast %cst : f32 to vector<40x160xf32>
      %31 = arith.addf %30, %29 : vector<40x160xf32>
      %32 = arith.mulf %31, %24 : vector<40x160xf32>
      %33 = arith.subf %20, %22 : vector<40x160xf32>
      %34 = arith.mulf %33, %33 : vector<40x160xf32>
      %35 = arith.mulf %32, %34 : vector<40x160xf32>
      %c0_14 = arith.constant 0 : index
      %c0_15 = arith.constant 0 : index
      %36 = vector.load %arg8[%c0_14, %c0_15] : memref<8x160xf32, #tpu.memory_space<vmem>>, vector<8x160xf32>
      %37 = vector.shape_cast %35 : vector<40x160xf32> to vector<5x8x160xf32>
      %cst_16 = arith.constant dense<0.000000e+00> : vector<8x160xf32>
      %38 = vector.multi_reduction <add>, %37, %cst_16 [0] : vector<5x8x160xf32> to vector<8x160xf32>
      %39 = arith.addf %36, %38 : vector<8x160xf32>
      %c0_17 = arith.constant 0 : index
      %c0_18 = arith.constant 0 : index
      %40 = vector.load %arg8[%c0_17, %c0_18] : memref<8x160xf32, #tpu.memory_space<vmem>>, vector<8x160xf32>
      tpu.vector_store %arg8[%c0_17, %c0_18], %39 {strides = array<i32>} : memref<8x160xf32, #tpu.memory_space<vmem>>, vector<8x160xf32>,
    } else {
    }
    %true = arith.constant true
    %12 = arith.xori %9, %true : i1
    %13 = arith.extui %12 : i1 to i32
    %c0_i32_7 = arith.constant 0 : i32
    %14 = arith.cmpi ne, %13, %c0_i32_7 : i32
    scf.if %14 {
      %c0_i32_10 = arith.constant 0 : i32
      %18 = tpu.assume_multiple %c0_i32_10, 40 : i32
      %19 = arith.index_cast %18 : i32 to index
      %c0_11 = arith.constant 0 : index
      %20 = vector.load %arg2[%19, %c0_11] : memref<40x160xf32, #tpu.memory_space<vmem>>, vector<40x160xf32>
      %21 = arith.index_cast %18 : i32 to index
      %c0_12 = arith.constant 0 : index
      %22 = vector.load %arg3[%21, %c0_12] : memref<40x160xf32, #tpu.memory_space<vmem>>, vector<40x160xf32>
      %23 = arith.index_cast %18 : i32 to index
      %c0_13 = arith.constant 0 : index
      %24 = vector.load %arg4[%23, %c0_13] : memref<40x160xf32, #tpu.memory_space<vmem>>, vector<40x160xf32>
      %25 = vector.broadcast %3 : vector<1x160xf32> to vector<40x160xf32>
      %26 = arith.subf %22, %25 : vector<40x160xf32>
      %27 = math.absf %26 : vector<40x160xf32>
      %28 = vector.broadcast %4 : vector<1x160xf32> to vector<40x160xf32>
      %29 = arith.mulf %27, %28 : vector<40x160xf32>
      %cst = arith.constant 1.000000e+00 : f32
      %30 = vector.broadcast %cst : f32 to vector<40x160xf32>
      %31 = arith.addf %30, %29 : vector<40x160xf32>
      %32 = arith.mulf %31, %24 : vector<40x160xf32>
      %33 = arith.subf %20, %22 : vector<40x160xf32>
      %34 = arith.mulf %33, %33 : vector<40x160xf32>
      %35 = arith.mulf %32, %34 : vector<40x160xf32>
      %36 = tpu.iota {dimensions = array<i32: 0>} : vector<40x160xi32>
      %37 = arith.addi %7, %18 : i32
      %38 = vector.broadcast %37 : i32 to vector<40x160xi32>
      %39 = arith.addi %36, %38 : vector<40x160xi32>
      %c40_i32_14 = arith.constant 40 : i32
      %40 = vector.broadcast %c40_i32_14 : i32 to vector<40x160xi32>
      %41 = arith.cmpi slt, %39, %40 : vector<40x160xi32>
      %cst_15 = arith.constant 0.000000e+00 : f32
      %42 = vector.broadcast %cst_15 : f32 to vector<40x160xf32>
      %43 = arith.select %41, %35, %42 : vector<40x160xi1>, vector<40x160xf32>
      %c0_16 = arith.constant 0 : index
      %c0_17 = arith.constant 0 : index
      %44 = vector.load %arg8[%c0_16, %c0_17] : memref<8x160xf32, #tpu.memory_space<vmem>>, vector<8x160xf32>
      %45 = vector.shape_cast %43 : vector<40x160xf32> to vector<5x8x160xf32>
      %cst_18 = arith.constant dense<0.000000e+00> : vector<8x160xf32>
      %46 = vector.multi_reduction <add>, %45, %cst_18 [0] : vector<5x8x160xf32> to vector<8x160xf32>
      %47 = arith.addf %44, %46 : vector<8x160xf32>
      %c0_19 = arith.constant 0 : index
      %c0_20 = arith.constant 0 : index
      %48 = vector.load %arg8[%c0_19, %c0_20] : memref<8x160xf32, #tpu.memory_space<vmem>>, vector<8x160xf32>
      tpu.vector_store %arg8[%c0_19, %c0_20], %47 {strides = array<i32>} : memref<8x160xf32, #tpu.memory_space<vmem>>, vector<8x160xf32>,
    } else {
    }
    %c0_i32_8 = arith.constant 0 : i32
    %15 = arith.cmpi eq, %arg1, %c0_i32_8 : i32
    %16 = arith.extui %15 : i1 to i32
    %c0_i32_9 = arith.constant 0 : i32
    %17 = arith.cmpi ne, %16, %c0_i32_9 : i32
    scf.if %17 {
      %c0_10 = arith.constant 0 : index
      %c0_11 = arith.constant 0 : index
      %18 = vector.load %arg8[%c0_10, %c0_11] : memref<8x160xf32, #tpu.memory_space<vmem>>, vector<8x160xf32>
      %19 = vector.shape_cast %18 : vector<8x160xf32> to vector<1x8x160xf32>
      %cst = arith.constant dense<0.000000e+00> : vector<1xf32>
      %20 = vector.multi_reduction <add>, %19, %cst [1, 2] : vector<1x8x160xf32> to vector<1xf32>
      %21 = vector.shape_cast %20 : vector<1xf32> to vector<1x1x1xf32>
      %22 = vector.extract %21[0, 0, 0] : f32 from vector<1x1x1xf32>
      %23 = vector.broadcast %22 : f32 to vector<8x128xf32>
      %c0_12 = arith.constant 0 : index
      %c0_13 = arith.constant 0 : index
      %c0_14 = arith.constant 0 : index
      %24 = vector.load %arg7[%c0_12, %c0_13, %c0_14] : memref<1x8x128xf32, #tpu.memory_space<vmem>>, vector<1x8x128xf32>
      %25 = vector.shape_cast %24 : vector<1x8x128xf32> to vector<8x128xf32>
      %26 = vector.shape_cast %23 : vector<8x128xf32> to vector<1x8x128xf32>
      tpu.vector_store %arg7[%c0_12, %c0_13, %c0_14], %26 {strides = array<i32>} : memref<1x8x128xf32, #tpu.memory_space<vmem>>, vector<1x8x128xf32>,
    } else {
    }
    return
  }
  func.func @transform_0(%arg0: i32, %arg1: i32) -> (i32, i32) {
    %c1_i32 = arith.constant 1 : i32
    %0 = arith.muli %arg0, %c1_i32 : i32
    %1 = arith.addi %0, %arg1 : i32
    %c0_i32 = arith.constant 0 : i32
    %2 = arith.minsi %1, %c0_i32 : i32
    %c0_i32_0 = arith.constant 0 : i32
    %c0_i32_1 = arith.constant 0 : i32
    return %2, %c0_i32_0 : i32, i32
  }
  func.func @transform_1(%arg0: i32, %arg1: i32) -> (i32, i32) {
    %c1_i32 = arith.constant 1 : i32
    %0 = arith.muli %arg0, %c1_i32 : i32
    %1 = arith.addi %0, %arg1 : i32
    %c0_i32 = arith.constant 0 : i32
    %2 = arith.minsi %1, %c0_i32 : i32
    %c0_i32_0 = arith.constant 0 : i32
    %c0_i32_1 = arith.constant 0 : i32
    return %2, %c0_i32_0 : i32, i32
  }
  func.func @transform_2(%arg0: i32, %arg1: i32) -> (i32, i32) {
    %c1_i32 = arith.constant 1 : i32
    %0 = arith.muli %arg0, %c1_i32 : i32
    %1 = arith.addi %0, %arg1 : i32
    %c0_i32 = arith.constant 0 : i32
    %2 = arith.minsi %1, %c0_i32 : i32
    %c0_i32_0 = arith.constant 0 : i32
    %c0_i32_1 = arith.constant 0 : i32
    return %2, %c0_i32_0 : i32, i32
  }
  func.func @transform_3(%arg0: i32, %arg1: i32) -> (i32, i32) {
    %c0_i32 = arith.constant 0 : i32
    %c0_i32_0 = arith.constant 0 : i32
    %c0_i32_1 = arith.constant 0 : i32
    return %c0_i32, %c0_i32_0 : i32, i32
  }
  func.func @transform_4(%arg0: i32, %arg1: i32) -> (i32, i32) {
    %c0_i32 = arith.constant 0 : i32
    %c0_i32_0 = arith.constant 0 : i32
    %c0_i32_1 = arith.constant 0 : i32
    return %c0_i32, %c0_i32_0 : i32, i32
  }
  func.func @transform_5(%arg0: i32, %arg1: i32) -> (i32, i32, i32) {
    %c0_i32 = arith.constant 0 : i32
    %c0_i32_0 = arith.constant 0 : i32
    %c0_i32_1 = arith.constant 0 : i32
    return %arg0, %c0_i32, %c0_i32_0 : i32, i32, i32
  }
}

</mosaic_0001>

<llo_original>
// kernel: tpu_custom_call.1
$region0: #{tpu_custom_call.1}
  #allocation0 [shape = 'u32[]', space=smem, size = 0x4, offset = 0x4, fixed_abs, tag = 'smem constant byte address 0x4 - core index']
  #allocation1 [shape = 'u32[72,128]{1,0:T(1,128)}', space=vmem, size = 0x9000, scoped, tag = 'internal scratch']
  #allocation2 [shape = 'f32[8,160]{1,0:T(8,128)}', space=vmem, size = 0x2000, scoped, tag = 'scratch operand']
  %s0 = inlined_call_operand.hbm [shape: f32[40,160], index: 0, kind: input, shape index: {}]
  %s1 = inlined_call_operand.hbm [shape: f32[40,160], index: 1, kind: input, shape index: {}]
  %s2 = inlined_call_operand.hbm [shape: f32[40,160], index: 2, kind: input, shape index: {}]
  %s3 = inlined_call_operand.vmem [shape: f32[1,160], index: 3, kind: input, shape index: {}]
  %s4 = inlined_call_operand.hbm [shape: f32[1,160], index: 4, kind: input, shape index: {}]
  %s5 = inlined_call_operand.hbm [shape: f32[1,8,128], index: 5, kind: output, shape index: {}]
  %s6 = sld [smem:[#allocation0]]
  $region62: #{tpu_custom_call.1} parent=0
    _
  %s8 = ssub.s32 1, %s6
  %s9 = scalar_select 0, %s8, %s6
  $region1: #{tpu_custom_call.1} parent=0
    #allocation3 [shape = 'u8[40960]{0}', space=vmem, size = 0xa000, scoped, tag = 'input window, operand 0, single buffered']
    #allocation4 [shape = 's32[1]{0}', space=sflag, size = 0x4, scoped, tag = 'scoped memory for tpu_custom_call.1']
    #allocation5 [shape = 's32[1]{0}', space=sflag, size = 0x4, scoped, tag = 'scoped memory for tpu_custom_call.1']
    #allocation6 [shape = 'u8[40960]{0}', space=vmem, size = 0xa000, scoped, tag = 'input window, operand 1, single buffered']
    #allocation7 [shape = 's32[1]{0}', space=sflag, size = 0x4, scoped, tag = 'scoped memory for tpu_custom_call.1']
    #allocation8 [shape = 'u8[40960]{0}', space=vmem, size = 0xa000, scoped, tag = 'input window, operand 2, single buffered']
    #allocation9 [shape = 'u8[1024]{0}', space=vmem, size = 0x400, scoped, tag = 'input window, operand 4, single buffered']
    #allocation10 [shape = 's32[1]{0}', space=sflag, size = 0x4, scoped, tag = 'scoped memory for tpu_custom_call.1']
    #allocation11 [shape = 'u8[4096]{0}', space=vmem, size = 0x1000, scoped, tag = 'output window, operand 0, single buffered']
    %10 = vsyncpa [#allocation4], 0
    %11 = vsyncpa [#allocation7], 0
    %12 = vsyncpa [#allocation10], 0
    %13 = vsyncpa [#allocation5], 0
    // Predicated region
    $region2: #{tpu_custom_call.1} parent=1 // pred_check
      _
    $region3: #{tpu_custom_call.1} parent=1 // pred_check_branch
      %15 = sbr.rel (0) target = $region5
    $region4: #{tpu_custom_call.1} parent=1 // pred_region
      %s16 = sadd.s32 0, 0
      %p17 = scmp.lt.s32.totalorder %s16, 0
      %s18 = scalar_select %p17, %s16, 0
      %s19 = smul.u32 5, %s18
      %21 = vsyncadd [#allocation4], 0
      %s22 = smul.addr %s19, 2
      %s23 = smul.addr %s22, 8
      %s24 = scalar_lea.hbm %s0, %s23
      %s25 = sshll.u32 %s24, 4
      %s26 = int_to_ptr.hbm [resolvable:$true] %s25
      %s27 = sshll.u32 [#allocation3], 4
      %s28 = int_to_ptr.vmem [resolvable:$true] %s27
      %33 = dma.hbm_to_vmem [thread:$0]  %s26, 1280, %s28, [#allocation4], 256, 256, 16
    $region5: #{tpu_custom_call.1} parent=1 // pred_fallthru
      _
    // Predicated region
    $region6: #{tpu_custom_call.1} parent=1 // pred_check
      _
    $region7: #{tpu_custom_call.1} parent=1 // pred_check_branch
      %35 = sbr.rel (0) target = $region9
    $region8: #{tpu_custom_call.1} parent=1 // pred_region
      %s36 = sadd.s32 0, 0
      %p37 = scmp.lt.s32.totalorder %s36, 0
      %s38 = scalar_select %p37, %s36, 0
      %s39 = smul.u32 5, %s38
      %41 = vsyncadd [#allocation7], 0
      %s42 = smul.addr %s39, 2
      %s43 = smul.addr %s42, 8
      %s44 = scalar_lea.hbm %s1, %s43
      %s45 = sshll.u32 %s44, 4
      %s46 = int_to_ptr.hbm [resolvable:$true] %s45
      %s47 = sshll.u32 [#allocation6], 4
      %s48 = int_to_ptr.vmem [resolvable:$true] %s47
      %53 = dma.hbm_to_vmem [thread:$0]  %s46, 1280, %s48, [#allocation7], 256, 256, 16
    $region9: #{tpu_custom_call.1} parent=1 // pred_fallthru
      _
    // Predicated region
    $region10: #{tpu_custom_call.1} parent=1 // pred_check
      _
    $region11: #{tpu_custom_call.1} parent=1 // pred_check_branch
      %55 = sbr.rel (0) target = $region13
    $region12: #{tpu_custom_call.1} parent=1 // pred_region
      %s56 = sadd.s32 0, 0
      %p57 = scmp.lt.s32.totalorder %s56, 0
      %s58 = scalar_select %p57, %s56, 0
      %s59 = smul.u32 5, %s58
      %61 = vsyncadd [#allocation7], 0
      %s62 = smul.addr %s59, 2
      %s63 = smul.addr %s62, 8
      %s64 = scalar_lea.hbm %s2, %s63
      %s65 = sshll.u32 %s64, 4
      %s66 = int_to_ptr.hbm [resolvable:$true] %s65
      %s67 = sshll.u32 [#allocation8], 4
      %s68 = int_to_ptr.vmem [resolvable:$true] %s67
      %73 = dma.hbm_to_vmem [thread:$0]  %s66, 1280, %s68, [#allocation7], 256, 256, 16
    $region13: #{tpu_custom_call.1} parent=1 // pred_fallthru
      _
    // Predicated region
    $region14: #{tpu_custom_call.1} parent=1 // pred_check
      _
    $region15: #{tpu_custom_call.1} parent=1 // pred_check_branch
      %75 = sbr.rel (0) target = $region17
    $region16: #{tpu_custom_call.1} parent=1 // pred_region
      _
    $region17: #{tpu_custom_call.1} parent=1 // pred_fallthru
      _
    // Predicated region
    $region18: #{tpu_custom_call.1} parent=1 // pred_check
      _
    $region19: #{tpu_custom_call.1} parent=1 // pred_check_branch
      %77 = sbr.rel (0) target = $region21
    $region20: #{tpu_custom_call.1} parent=1 // pred_region
      %79 = vsyncadd [#allocation10], 0
      %s81 = sshll.u32 %s4, 4
      %s82 = int_to_ptr.hbm [resolvable:$true] %s81
      %s83 = sshll.u32 [#allocation9], 4
      %s84 = int_to_ptr.vmem [resolvable:$true] %s83
      %86 = dma.hbm_to_vmem [thread:$0]  %s82, 32, %s84, [#allocation10]
    $region21: #{tpu_custom_call.1} parent=1 // pred_fallthru
      _
    // Predicated region
    $region22: #{tpu_custom_call.1} parent=1 // pred_check
      _
    $region23: #{tpu_custom_call.1} parent=1 // pred_check_branch
      %88 = sbr.rel (0) target = $region25
    $region24: #{tpu_custom_call.1} parent=1 // pred_region
      %90 = dma.done [#allocation4], 1280
    $region25: #{tpu_custom_call.1} parent=1 // pred_fallthru
      _
    // Predicated region
    $region26: #{tpu_custom_call.1} parent=1 // pred_check
      _
    $region27: #{tpu_custom_call.1} parent=1 // pred_check_branch
      %92 = sbr.rel (0) target = $region29
    $region28: #{tpu_custom_call.1} parent=1 // pred_region
      %94 = dma.done [#allocation7], 1280
    $region29: #{tpu_custom_call.1} parent=1 // pred_fallthru
      _
    // Predicated region
    $region30: #{tpu_custom_call.1} parent=1 // pred_check
      _
    $region31: #{tpu_custom_call.1} parent=1 // pred_check_branch
      %96 = sbr.rel (0) target = $region33
    $region32: #{tpu_custom_call.1} parent=1 // pred_region
      %98 = dma.done [#allocation7], 1280
    $region33: #{tpu_custom_call.1} parent=1 // pred_fallthru
      _
    // Predicated region
    $region34: #{tpu_custom_call.1} parent=1 // pred_check
      _
    $region35: #{tpu_custom_call.1} parent=1 // pred_check_branch
      %100 = sbr.rel (0) target = $region37
    $region36: #{tpu_custom_call.1} parent=1 // pred_region
      %102 = dma.done [#allocation10], 32
    $region37: #{tpu_custom_call.1} parent=1 // pred_fallthru
      _
    %s103 = sadd.s32 0, 0
    %p104 = scmp.lt.s32.totalorder %s103, 0
    %s105 = scalar_select %p104, %s103, 0
    %s106 = smul.u32 5, %s105
    %s107 = sadd.s32 0, 0
    %p108 = scmp.lt.s32.totalorder %s107, 0
    %s109 = scalar_select %p108, %s107, 0
    %s110 = smul.u32 5, %s109
    %s111 = sadd.s32 0, 0
    %p112 = scmp.lt.s32.totalorder %s111, 0
    %s113 = scalar_select %p112, %s111, 0
    %s114 = smul.u32 5, %s113
    %p115 = scmp.eq.s32.totalorder 0, 0
    // Predicated region
    $region38: #{tpu_custom_call.1} parent=1 // pred_check
      %p116 = pneg %p115
    $region39: #{tpu_custom_call.1} parent=1 // pred_check_branch
      %118 = sbr.rel (%p116) target = $region41
    $region40: #{tpu_custom_call.1} parent=1 // pred_region
      %119 = vst [vmem:[#allocation2] sm:$0xff] 0.0
      %vm120 = vcmask 261120
      %121 = vst.msk [vmem:[#allocation2 + $0x8] sm:$0xff] %vm120, 0.0
    $region41: #{tpu_custom_call.1} parent=1 // pred_fallthru
      _
    %v122 = vld [vmem:[%s3] sm:$0x3]
    %v123 = vld [vmem:[#allocation9] sm:$0x3]
    %s124 = sadd.s32 0, 0
    %s125 = smul.u32 %s124, 40
    %s126 = sadd.s32 %s125, 40
    %p127 = scmp.le.s32.totalorder %s126, 40
    // Predicated region
    $region42: #{tpu_custom_call.1} parent=1 // pred_check
      %p128 = pneg %p127
    $region43: #{tpu_custom_call.1} parent=1 // pred_check_branch
      %130 = sbr.rel (%p128) target = $region45
    $region44: #{tpu_custom_call.1} parent=1 // pred_region
      %s131 = smul.u32 0, 2
      %s132 = smul.addr %s131, 8
      %s133 = scalar_lea.vmem [#allocation3], %s132
      %v134 = vld [vmem:[%s133] sm:$0xff]
      %v135 = vld [vmem:[%s133 + $0x8] sm:$0xff]
      %v136 = vld [vmem:[%s133 + $0x10] sm:$0xff]
      %v137 = vld [vmem:[%s133 + $0x18] sm:$0xff]
      %v138 = vld [vmem:[%s133 + $0x20] sm:$0xff]
      %v139 = vld [vmem:[%s133 + $0x28] sm:$0xff]
      %v140 = vld [vmem:[%s133 + $0x30] sm:$0xff]
      %v141 = vld [vmem:[%s133 + $0x38] sm:$0xff]
      %v142 = vld [vmem:[%s133 + $0x40] sm:$0xff]
      %v143 = vld [vmem:[%s133 + $0x48] sm:$0xff]
      %s144 = smul.addr %s131, 8
      %s145 = scalar_lea.vmem [#allocation6], %s144
      %v146 = vld [vmem:[%s145] sm:$0xff]
      %v147 = vld [vmem:[%s145 + $0x8] sm:$0xff]
      %v148 = vld [vmem:[%s145 + $0x10] sm:$0xff]
      %v149 = vld [vmem:[%s145 + $0x18] sm:$0xff]
      %v150 = vld [vmem:[%s145 + $0x20] sm:$0xff]
      %v151 = vld [vmem:[%s145 + $0x28] sm:$0xff]
      %v152 = vld [vmem:[%s145 + $0x30] sm:$0xff]
      %v153 = vld [vmem:[%s145 + $0x38] sm:$0xff]
      %v154 = vld [vmem:[%s145 + $0x40] sm:$0xff]
      %v155 = vld [vmem:[%s145 + $0x48] sm:$0xff]
      %s156 = smul.addr %s131, 8
      %s157 = scalar_lea.vmem [#allocation8], %s156
      %v158 = vld [vmem:[%s157] sm:$0xff]
      %v159 = vld [vmem:[%s157 + $0x8] sm:$0xff]
      %v160 = vld [vmem:[%s157 + $0x10] sm:$0xff]
      %v161 = vld [vmem:[%s157 + $0x18] sm:$0xff]
      %v162 = vld [vmem:[%s157 + $0x20] sm:$0xff]
      %v163 = vld [vmem:[%s157 + $0x28] sm:$0xff]
      %v164 = vld [vmem:[%s157 + $0x30] sm:$0xff]
      %v165 = vld [vmem:[%s157 + $0x38] sm:$0xff]
      %v166 = vld [vmem:[%s157 + $0x40] sm:$0xff]
      %v167 = vld [vmem:[%s157 + $0x48] sm:$0xff]
      %v169 = vperm.slane %v122, 0
      %v170 = vperm.slane %v122, 1
      %v173 = vsub.f32 %v146, %v169
      %v174 = vsub.f32 %v147, %v170
      %v175 = vsub.f32 %v148, %v169
      %v176 = vsub.f32 %v149, %v170
      %v177 = vsub.f32 %v150, %v169
      %v178 = vsub.f32 %v151, %v170
      %v179 = vsub.f32 %v152, %v169
      %v180 = vsub.f32 %v153, %v170
      %v181 = vsub.f32 %v154, %v169
      %v182 = vsub.f32 %v155, %v170
      %v183 = vand.u32 2147483647, %v173
      %v184 = vand.u32 2147483647, %v174
      %v185 = vand.u32 2147483647, %v175
      %v186 = vand.u32 2147483647, %v176
      %v187 = vand.u32 2147483647, %v177
      %v188 = vand.u32 2147483647, %v178
      %v189 = vand.u32 2147483647, %v179
      %v190 = vand.u32 2147483647, %v180
      %v191 = vand.u32 2147483647, %v181
      %v192 = vand.u32 2147483647, %v182
      %v194 = vperm.slane %v123, 0
      %v195 = vperm.slane %v123, 1
      %v198 = vmul.f32 %v183, %v194
      %v199 = vmul.f32 %v184, %v195
      %v200 = vmul.f32 %v185, %v194
      %v201 = vmul.f32 %v186, %v195
      %v202 = vmul.f32 %v187, %v194
      %v203 = vmul.f32 %v188, %v195
      %v204 = vmul.f32 %v189, %v194
      %v205 = vmul.f32 %v190, %v195
      %v206 = vmul.f32 %v191, %v194
      %v207 = vmul.f32 %v192, %v195
      %v208 = vadd.f32 %v198, 1.0
      %v209 = vadd.f32 %v199, 1.0
      %v210 = vadd.f32 %v200, 1.0
      %v211 = vadd.f32 %v201, 1.0
      %v212 = vadd.f32 %v202, 1.0
      %v213 = vadd.f32 %v203, 1.0
      %v214 = vadd.f32 %v204, 1.0
      %v215 = vadd.f32 %v205, 1.0
      %v216 = vadd.f32 %v206, 1.0
      %v217 = vadd.f32 %v207, 1.0
      %v218 = vmul.f32 %v208, %v158
      %v219 = vmul.f32 %v209, %v159
      %v220 = vmul.f32 %v210, %v160
      %v221 = vmul.f32 %v211, %v161
      %v222 = vmul.f32 %v212, %v162
      %v223 = vmul.f32 %v213, %v163
      %v224 = vmul.f32 %v214, %v164
      %v225 = vmul.f32 %v215, %v165
      %v226 = vmul.f32 %v216, %v166
      %v227 = vmul.f32 %v217, %v167
      %v228 = vsub.f32 %v134, %v146
      %v229 = vsub.f32 %v135, %v147
      %v230 = vsub.f32 %v136, %v148
      %v231 = vsub.f32 %v137, %v149
      %v232 = vsub.f32 %v138, %v150
      %v233 = vsub.f32 %v139, %v151
      %v234 = vsub.f32 %v140, %v152
      %v235 = vsub.f32 %v141, %v153
      %v236 = vsub.f32 %v142, %v154
      %v237 = vsub.f32 %v143, %v155
      %v238 = vmul.f32 %v228, %v228
      %v239 = vmul.f32 %v229, %v229
      %v240 = vmul.f32 %v230, %v230
      %v241 = vmul.f32 %v231, %v231
      %v242 = vmul.f32 %v232, %v232
      %v243 = vmul.f32 %v233, %v233
      %v244 = vmul.f32 %v234, %v234
      %v245 = vmul.f32 %v235, %v235
      %v246 = vmul.f32 %v236, %v236
      %v247 = vmul.f32 %v237, %v237
      %v248 = vmul.f32 %v218, %v238
      %v249 = vmul.f32 %v219, %v239
      %v250 = vmul.f32 %v220, %v240
      %v251 = vmul.f32 %v221, %v241
      %v252 = vmul.f32 %v222, %v242
      %v253 = vmul.f32 %v223, %v243
      %v254 = vmul.f32 %v224, %v244
      %v255 = vmul.f32 %v225, %v245
      %v256 = vmul.f32 %v226, %v246
      %v257 = vmul.f32 %v227, %v247
      %v258 = vld [vmem:[#allocation2] sm:$0xff]
      %v259 = vld [vmem:[#allocation2 + $0x8] sm:$0xff]
      %v260 = vadd.f32 %v248, %v250
      %v261 = vadd.f32 %v260, %v252
      %v262 = vadd.f32 %v261, %v254
      %v263 = vadd.f32 %v262, %v256
      %vm264 = vcmask 261120
      %v265 = vsel %vm264, %v249, 0.0
      %v266 = vsel %vm264, %v251, 0.0
      %v267 = vadd.f32 %v265, %v266
      %v268 = vsel %vm264, %v253, 0.0
      %v269 = vadd.f32 %v267, %v268
      %v270 = vsel %vm264, %v255, 0.0
      %v271 = vadd.f32 %v269, %v270
      %v272 = vsel %vm264, %v257, 0.0
      %v273 = vadd.f32 %v271, %v272
      %v274 = vadd.f32 %v258, %v263
      %v275 = vadd.f32 %v259, %v273
      %276 = vst [vmem:[#allocation2] sm:$0xff] %v274
      %277 = vst.msk [vmem:[#allocation2 + $0x8] sm:$0xff] %vm264, %v275
    $region45: #{tpu_custom_call.1} parent=1 // pred_fallthru
      _
    %p278 = scmp.gt.s32.totalorder %s126, 40
    // Predicated region
    $region46: #{tpu_custom_call.1} parent=1 // pred_check
      %p279 = pneg %p278
    $region47: #{tpu_custom_call.1} parent=1 // pred_check_branch
      %281 = sbr.rel (%p279) target = $region49
    $region48: #{tpu_custom_call.1} parent=1 // pred_region
      %s282 = smul.u32 0, 2
      %s283 = smul.addr %s282, 8
      %s284 = scalar_lea.vmem [#allocation3], %s283
      %v285 = vld [vmem:[%s284] sm:$0xff]
      %v286 = vld [vmem:[%s284 + $0x8] sm:$0xff]
      %v287 = vld [vmem:[%s284 + $0x10] sm:$0xff]
      %v288 = vld [vmem:[%s284 + $0x18] sm:$0xff]
      %v289 = vld [vmem:[%s284 + $0x20] sm:$0xff]
      %v290 = vld [vmem:[%s284 + $0x28] sm:$0xff]
      %v291 = vld [vmem:[%s284 + $0x30] sm:$0xff]
      %v292 = vld [vmem:[%s284 + $0x38] sm:$0xff]
      %v293 = vld [vmem:[%s284 + $0x40] sm:$0xff]
      %v294 = vld [vmem:[%s284 + $0x48] sm:$0xff]
      %s295 = smul.addr %s282, 8
      %s296 = scalar_lea.vmem [#allocation6], %s295
      %v297 = vld [vmem:[%s296] sm:$0xff]
      %v298 = vld [vmem:[%s296 + $0x8] sm:$0xff]
      %v299 = vld [vmem:[%s296 + $0x10] sm:$0xff]
      %v300 = vld [vmem:[%s296 + $0x18] sm:$0xff]
      %v301 = vld [vmem:[%s296 + $0x20] sm:$0xff]
      %v302 = vld [vmem:[%s296 + $0x28] sm:$0xff]
      %v303 = vld [vmem:[%s296 + $0x30] sm:$0xff]
      %v304 = vld [vmem:[%s296 + $0x38] sm:$0xff]
      %v305 = vld [vmem:[%s296 + $0x40] sm:$0xff]
      %v306 = vld [vmem:[%s296 + $0x48] sm:$0xff]
      %s307 = smul.addr %s282, 8
      %s308 = scalar_lea.vmem [#allocation8], %s307
      %v309 = vld [vmem:[%s308] sm:$0xff]
      %v310 = vld [vmem:[%s308 + $0x8] sm:$0xff]
      %v311 = vld [vmem:[%s308 + $0x10] sm:$0xff]
      %v312 = vld [vmem:[%s308 + $0x18] sm:$0xff]
      %v313 = vld [vmem:[%s308 + $0x20] sm:$0xff]
      %v314 = vld [vmem:[%s308 + $0x28] sm:$0xff]
      %v315 = vld [vmem:[%s308 + $0x30] sm:$0xff]
      %v316 = vld [vmem:[%s308 + $0x38] sm:$0xff]
      %v317 = vld [vmem:[%s308 + $0x40] sm:$0xff]
      %v318 = vld [vmem:[%s308 + $0x48] sm:$0xff]
      %v320 = vperm.slane %v122, 0
      %v321 = vperm.slane %v122, 1
      %v324 = vsub.f32 %v297, %v320
      %v325 = vsub.f32 %v298, %v321
      %v326 = vsub.f32 %v299, %v320
      %v327 = vsub.f32 %v300, %v321
      %v328 = vsub.f32 %v301, %v320
      %v329 = vsub.f32 %v302, %v321
      %v330 = vsub.f32 %v303, %v320
      %v331 = vsub.f32 %v304, %v321
      %v332 = vsub.f32 %v305, %v320
      %v333 = vsub.f32 %v306, %v321
      %v334 = vand.u32 2147483647, %v324
      %v335 = vand.u32 2147483647, %v325
      %v336 = vand.u32 2147483647, %v326
      %v337 = vand.u32 2147483647, %v327
      %v338 = vand.u32 2147483647, %v328
      %v339 = vand.u32 2147483647, %v329
      %v340 = vand.u32 2147483647, %v330
      %v341 = vand.u32 2147483647, %v331
      %v342 = vand.u32 2147483647, %v332
      %v343 = vand.u32 2147483647, %v333
      %v345 = vperm.slane %v123, 0
      %v346 = vperm.slane %v123, 1
      %v349 = vmul.f32 %v334, %v345
      %v350 = vmul.f32 %v335, %v346
      %v351 = vmul.f32 %v336, %v345
      %v352 = vmul.f32 %v337, %v346
      %v353 = vmul.f32 %v338, %v345
      %v354 = vmul.f32 %v339, %v346
      %v355 = vmul.f32 %v340, %v345
      %v356 = vmul.f32 %v341, %v346
      %v357 = vmul.f32 %v342, %v345
      %v358 = vmul.f32 %v343, %v346
      %v359 = vadd.f32 %v349, 1.0
      %v360 = vadd.f32 %v350, 1.0
      %v361 = vadd.f32 %v351, 1.0
      %v362 = vadd.f32 %v352, 1.0
      %v363 = vadd.f32 %v353, 1.0
      %v364 = vadd.f32 %v354, 1.0
      %v365 = vadd.f32 %v355, 1.0
      %v366 = vadd.f32 %v356, 1.0
      %v367 = vadd.f32 %v357, 1.0
      %v368 = vadd.f32 %v358, 1.0
      %v369 = vmul.f32 %v359, %v309
      %v370 = vmul.f32 %v360, %v310
      %v371 = vmul.f32 %v361, %v311
      %v372 = vmul.f32 %v362, %v312
      %v373 = vmul.f32 %v363, %v313
      %v374 = vmul.f32 %v364, %v314
      %v375 = vmul.f32 %v365, %v315
      %v376 = vmul.f32 %v366, %v316
      %v377 = vmul.f32 %v367, %v317
      %v378 = vmul.f32 %v368, %v318
      %v379 = vsub.f32 %v285, %v297
      %v380 = vsub.f32 %v286, %v298
      %v381 = vsub.f32 %v287, %v299
      %v382 = vsub.f32 %v288, %v300
      %v383 = vsub.f32 %v289, %v301
      %v384 = vsub.f32 %v290, %v302
      %v385 = vsub.f32 %v291, %v303
      %v386 = vsub.f32 %v292, %v304
      %v387 = vsub.f32 %v293, %v305
      %v388 = vsub.f32 %v294, %v306
      %v389 = vmul.f32 %v379, %v379
      %v390 = vmul.f32 %v380, %v380
      %v391 = vmul.f32 %v381, %v381
      %v392 = vmul.f32 %v382, %v382
      %v393 = vmul.f32 %v383, %v383
      %v394 = vmul.f32 %v384, %v384
      %v395 = vmul.f32 %v385, %v385
      %v396 = vmul.f32 %v386, %v386
      %v397 = vmul.f32 %v387, %v387
      %v398 = vmul.f32 %v388, %v388
      %v399 = vmul.f32 %v369, %v389
      %v400 = vmul.f32 %v370, %v390
      %v401 = vmul.f32 %v371, %v391
      %v402 = vmul.f32 %v372, %v392
      %v403 = vmul.f32 %v373, %v393
      %v404 = vmul.f32 %v374, %v394
      %v405 = vmul.f32 %v375, %v395
      %v406 = vmul.f32 %v376, %v396
      %v407 = vmul.f32 %v377, %v397
      %v408 = vmul.f32 %v378, %v398
      %v409 = vlaneseq
      %v410 = vshrl.u32 %v409, 7
      %v411 = vadd.s32 %v410, 8
      %v412 = vadd.s32 %v410, 16
      %v413 = vadd.s32 %v410, 24
      %v414 = vadd.s32 %v410, 32
      %s415 = sadd.s32 %s125, 0
      %v416 = vstv %s415
      %v417 = vadd.s32 %v410, %v416
      %v418 = vadd.s32 %v411, %v416
      %v419 = vadd.s32 %v412, %v416
      %v420 = vadd.s32 %v413, %v416
      %v421 = vadd.s32 %v414, %v416
      %vm422 = vcmp.lt.s32.totalorder %v417, 40
      %vm423 = vcmp.lt.s32.totalorder %v418, 40
      %vm424 = vcmp.lt.s32.totalorder %v419, 40
      %vm425 = vcmp.lt.s32.totalorder %v420, 40
      %vm426 = vcmp.lt.s32.totalorder %v421, 40
      %v427 = vsel %vm422, %v399, 0.0
      %v428 = vsel %vm422, %v400, 0.0
      %v429 = vsel %vm423, %v401, 0.0
      %v430 = vsel %vm423, %v402, 0.0
      %v431 = vsel %vm424, %v403, 0.0
      %v432 = vsel %vm424, %v404, 0.0
      %v433 = vsel %vm425, %v405, 0.0
      %v434 = vsel %vm425, %v406, 0.0
      %v435 = vsel %vm426, %v407, 0.0
      %v436 = vsel %vm426, %v408, 0.0
      %v437 = vld [vmem:[#allocation2] sm:$0xff]
      %v438 = vld [vmem:[#allocation2 + $0x8] sm:$0xff]
      %v439 = vadd.f32 %v427, %v429
      %v440 = vadd.f32 %v439, %v431
      %v441 = vadd.f32 %v440, %v433
      %v442 = vadd.f32 %v441, %v435
      %vm443 = vcmask 261120
      %v444 = vsel %vm443, %v428, 0.0
      %v445 = vsel %vm443, %v430, 0.0
      %v446 = vadd.f32 %v444, %v445
      %v447 = vsel %vm443, %v432, 0.0
      %v448 = vadd.f32 %v446, %v447
      %v449 = vsel %vm443, %v434, 0.0
      %v450 = vadd.f32 %v448, %v449
      %v451 = vsel %vm443, %v436, 0.0
      %v452 = vadd.f32 %v450, %v451
      %v453 = vadd.f32 %v437, %v442
      %v454 = vadd.f32 %v438, %v452
      %455 = vst [vmem:[#allocation2] sm:$0xff] %v453
      %456 = vst.msk [vmem:[#allocation2 + $0x8] sm:$0xff] %vm443, %v454
    $region49: #{tpu_custom_call.1} parent=1 // pred_fallthru
      _
    // Predicated region
    $region50: #{tpu_custom_call.1} parent=1 // pred_check
      %p457 = pneg %p115
    $region51: #{tpu_custom_call.1} parent=1 // pred_check_branch
      %459 = sbr.rel (%p457) target = $region53
    $region52: #{tpu_custom_call.1} parent=1 // pred_region
      %v460 = vld [vmem:[#allocation2] sm:$0xff]
      %v461 = vld [vmem:[#allocation2 + $0x8] sm:$0xff]
      %vm462 = vcmask 261120
      %v463 = vsel %vm462, %v461, 0.0
      %v464 = vadd.f32 %v460, %v463
      %465 = vadd.xlane.f32.xlu0 %v464
      %v466 = vpop.xlane.xlu0 %465
      %v467 = vrot.slane %v466, 4
      %v468 = vadd.f32 %v466, %v467
      %v469 = vrot.slane %v468, 2
      %v470 = vadd.f32 %v468, %v469
      %v471 = vrot.slane %v470, 1
      %v472 = vadd.f32 %v470, %v471
      %s473 = vtos %v472
      %v474 = vstv %s473
      %475 = vst [vmem:[#allocation11] sm:$0xff] %v474
    $region53: #{tpu_custom_call.1} parent=1 // pred_fallthru
      _
    // Predicated region
    $region54: #{tpu_custom_call.1} parent=1 // pred_check
      _
    $region55: #{tpu_custom_call.1} parent=1 // pred_check_branch
      %477 = sbr.rel (0) target = $region57
    $region56: #{tpu_custom_call.1} parent=1 // pred_region
      %479 = vsyncadd [#allocation5], 0
      %s481 = sshll.u32 [#allocation11], 4
      %s482 = int_to_ptr.vmem [resolvable:$true] %s481
      %s483 = sshll.u32 %s5, 4
      %s484 = int_to_ptr.hbm [resolvable:$true] %s483
      %486 = dma.vmem_to_hbm [thread:$0]  %s482, 128, %s484, [#allocation5]
    $region57: #{tpu_custom_call.1} parent=1 // pred_fallthru
      _
    // Predicated region
    $region58: #{tpu_custom_call.1} parent=1 // pred_check
      _
    $region59: #{tpu_custom_call.1} parent=1 // pred_check_branch
      %488 = sbr.rel (0) target = $region61
    $region60: #{tpu_custom_call.1} parent=1 // pred_region
      %490 = dma.done [#allocation5], 128
    $region61: #{tpu_custom_call.1} parent=1 // pred_fallthru
      _
    %491 = vsyncpa [#allocation4], 1
    %492 = vsyncpa [#allocation7], 1
    %493 = vsyncpa [#allocation10], 1
    %494 = vsyncpa [#allocation5], 1

</llo_original>
